<compile_context>
chip_gen: v7x
topology: tpu7x:2x2x1
jax: 0.10.0
libtpu: 0.0.40
codegen_flags: <defaults>
</compile_context>

<pallas_src>
import jax
import jax.numpy as jnp
from jax.experimental import pallas as pl
from jax.experimental.pallas import tpu as pltpu

N_ELEC = 7                      # 2 data electrodes + 5 control electrodes
DATA_IDX = (0, 4)               # data_input_indices = [0, 4] per node
CTRL_IDX = (1, 2, 3, 5, 6)
HID = 32                        # synthetic surrogate hidden width
AMPLIFICATION = 2.0             # synthetic output amplification
BN_EPS = 1e-5

_WSLAB_ROWS = 40                # 32 rows w2^T + 1 row w3_amp, padded to 8*k

# column-slab [32, 8] lane layout
_C_WEFF_L1 = 0      # cols 0:2  w_eff_l1^T   [32, 2]
_C_BIAS_L1 = 2      # cols 2:4  bias_l1^T    [32, 2]  (per node)
_C_WEFF_OUT = 4     # cols 4:6  w_eff_out^T  [32, 2]
_C_BIAS_OUT = 6     # col  6    bias_out^T   [32, 1]
_C_B2 = 7           # col  7    b2^T         [32, 1]

# SMEM scalar layout
_S_GAMMA0, _S_GAMMA1, _S_BETA0, _S_BETA1, _S_B3AMP = 0, 1, 2, 3, 4


def _arch21_kernel(xT_ref, wslab_ref, cslab_ref, scal_ref, out_ref):
    xT = xT_ref[...]                                   # [2, B]  (batch on lanes)

    w2T = wslab_ref[0:HID, :]                          # [32, 32] = w2^T
    w3_amp = wslab_ref[HID:HID + 1, :]                 # [1, 32]  = (w3*amp)^T

    cols = cslab_ref[...]                              # [32, 8]
    w_eff_l1T = cols[:, _C_WEFF_L1:_C_WEFF_L1 + 2]     # [32, 2]
    bias_l1T = cols[:, _C_BIAS_L1:_C_BIAS_L1 + 2]      # [32, 2]
    w_eff_outT = cols[:, _C_WEFF_OUT:_C_WEFF_OUT + 2]  # [32, 2]
    bias_outT = cols[:, _C_BIAS_OUT:_C_BIAS_OUT + 1]   # [32, 1]
    b2_col = cols[:, _C_B2:_C_B2 + 1]                  # [32, 1]

    g0 = scal_ref[_S_GAMMA0]
    g1 = scal_ref[_S_GAMMA1]
    be0 = scal_ref[_S_BETA0]
    be1 = scal_ref[_S_BETA1]
    b3_amp = scal_ref[_S_B3AMP]

    def surrogate_tail(h1):
        # shared processor layers 2+3 in feature-major layout:
        #   relu(w2^T @ h1 + b2) then head as [1,32]@[32,B] (lane-dense row).
        h2 = jnp.maximum(
            jnp.dot(w2T, h1, preferred_element_type=jnp.float32) + b2_col, 0.0)
        return jnp.dot(w3_amp, h2, preferred_element_type=jnp.float32)   # [1, B]

    # ---- DNPU layer 1 (2 nodes, identical data inputs) ----
    # K=2 contraction as VPU broadcast-FMA (no MXU fill/drain for K=2):
    t = (w_eff_l1T[:, 0:1] * xT[0:1, :]
         + w_eff_l1T[:, 1:2] * xT[1:2, :])                                # [32, B]
    y0 = surrogate_tail(jnp.maximum(t + bias_l1T[:, 0:1], 0.0))          # [1, B]
    y1 = surrogate_tail(jnp.maximum(t + bias_l1T[:, 1:2], 0.0))          # [1, B]
    # (the surrogate head bias b3*amp is a per-node constant; BatchNorm's
    #  mean subtraction cancels it exactly, so it is omitted for layer 1)

    # ---- BatchNorm1d (training-mode batch stats) + sigmoid, per node ----
    def bn_sigmoid(y, g, be):
        m = jnp.mean(y, axis=1, keepdims=True)                           # [1, 1]
        c = y - m
        v = jnp.mean(c * c, axis=1, keepdims=True)                       # biased var
        return jax.nn.sigmoid(c * (g * jax.lax.rsqrt(v + BN_EPS)) + be)  # [1, B]

    s0 = bn_sigmoid(y0, g0, be0)
    s1 = bn_sigmoid(y1, g1, be1)

    # ---- DNPU output layer (1 node), folded scatter + input transform ----
    h1o = jnp.maximum(
        w_eff_outT[:, 0:1] * s0 + w_eff_outT[:, 1:2] * s1 + bias_outT, 0.0)  # [32, B]
    out_ref[...] = surrogate_tail(h1o) + b3_amp                              # [1, B]


def make_params():
    key = jax.random.PRNGKey(0)
    k1, k2, k3, k4, k5 = jax.random.split(key, 5)

    # Electrode-placement scatter matrices.
    pdata = jnp.zeros((2, N_ELEC), jnp.float32)
    pdata = pdata.at[0, DATA_IDX[0]].set(1.0).at[1, DATA_IDX[1]].set(1.0)
    pctrl = jnp.zeros((5, N_ELEC), jnp.float32)
    for k, idx in enumerate(CTRL_IDX):
        pctrl = pctrl.at[k, idx].set(1.0)

    # Synthetic surrogate MLP (shared processor 7 -> 32 -> 32 -> 1, ReLU).
    w1 = 0.3 * jax.random.normal(k1, (N_ELEC, HID), jnp.float32)
    w2 = 0.3 * jax.random.normal(k2, (HID, HID), jnp.float32)
    w3 = 0.3 * jax.random.normal(k3, (HID, 1), jnp.float32)
    b1 = jnp.zeros((1, HID), jnp.float32)
    b2 = jnp.zeros((1, HID), jnp.float32)
    b3 = jnp.zeros((1, 1), jnp.float32)

    # Learnable control voltages: 2 nodes x 5 (layer 1) + 1 node x 5 (out).
    ctrl_l1 = jax.random.uniform(k4, (2, 5), jnp.float32, -0.5, 0.5)
    ctrl_out = jax.random.uniform(k5, (1, 5), jnp.float32, -0.5, 0.5)

    # Input transforms: map input_range onto data-electrode voltage range.
    vmin, vmax = -0.55, 0.325
    sc_l1 = jnp.full((1, 2), (vmax - vmin) / 2.0, jnp.float32)   # range [-1, 1]
    off_l1 = jnp.full((1, 2), vmin + (vmax - vmin) / 2.0, jnp.float32)
    sc_out = jnp.full((1, 2), (vmax - vmin), jnp.float32)        # range [0, 1]
    off_out = jnp.full((1, 2), vmin, jnp.float32)

    # BatchNorm affine params (init: identity).
    gamma = jnp.ones((1, 2), jnp.float32)
    beta = jnp.zeros((1, 2), jnp.float32)

    return dict(pdata=pdata, pctrl=pctrl, ctrl_l1=ctrl_l1, ctrl_out=ctrl_out,
                w1=w1, b1=b1, w2=w2, b2=b2, w3=w3, b3=b3,
                sc_l1=sc_l1, off_l1=off_l1, sc_out=sc_out, off_out=off_out,
                gamma=gamma, beta=beta)


def _pack_params(p):
    """Fold scatter / input-transform / amplification into effective weights and
    pack everything into feature-major slabs (trace-time, zero kernel cost)."""
    pdw1 = p['pdata'] @ p['w1']                    # [2, 32]
    pcw1 = p['pctrl'] @ p['w1']                    # [5, 32]

    # layer 1:  pre_n = x @ (sc^T * pdw1) + (off @ pdw1 + ctrl_n @ pcw1 + b1)
    w_eff_l1 = p['sc_l1'].reshape(2, 1) * pdw1                       # [2, 32]
    bias_l1 = p['off_l1'] @ pdw1 + p['ctrl_l1'] @ pcw1 + p['b1']     # [2, 32]
    # output layer (single node)
    w_eff_out = p['sc_out'].reshape(2, 1) * pdw1                     # [2, 32]
    bias_out = p['off_out'] @ pdw1 + p['ctrl_out'] @ pcw1 + p['b1']  # [1, 32]

    # row slab: rows 0:32 = w2^T, row 32 = (w3 * amplification)^T
    wslab = jnp.zeros((_WSLAB_ROWS, HID), jnp.float32)
    wslab = wslab.at[0:HID].set(p['w2'].T)
    wslab = wslab.at[HID].set(p['w3'][:, 0] * AMPLIFICATION)

    # column slab [32, 8]: per-feature columns consumed directly in [32, B] layout
    cslab = jnp.zeros((HID, 8), jnp.float32)
    cslab = cslab.at[:, _C_WEFF_L1:_C_WEFF_L1 + 2].set(w_eff_l1.T)
    cslab = cslab.at[:, _C_BIAS_L1:_C_BIAS_L1 + 2].set(bias_l1.T)
    cslab = cslab.at[:, _C_WEFF_OUT:_C_WEFF_OUT + 2].set(w_eff_out.T)
    cslab = cslab.at[:, _C_BIAS_OUT].set(bias_out[0])
    cslab = cslab.at[:, _C_B2].set(p['b2'][0])

    # SMEM scalars: gamma0, gamma1, beta0, beta1, b3*amp
    scal = jnp.zeros((8,), jnp.float32)
    scal = scal.at[0:2].set(p['gamma'][0])
    scal = scal.at[2:4].set(p['beta'][0])
    scal = scal.at[4].set(p['b3'][0, 0] * AMPLIFICATION)
    return wslab, cslab, scal


def arch21_forward(x, p):
    B = x.shape[0]
    wslab, cslab, scal = _pack_params(p)
    xT = x.T                                           # [2, B] batch-on-lanes

    vmem = pl.BlockSpec(memory_space=pltpu.MemorySpace.VMEM)
    smem = pl.BlockSpec(memory_space=pltpu.MemorySpace.SMEM)

    # Full batch resident in one block (exact BatchNorm stats); bound scoped
    # VMEM explicitly: params + O([32,B]) f32 intermediates, with headroom.
    vmem_limit = int(min(48 * 1024 * 1024, 8 * 1024 * 1024 + 4096 * B))

    yT = pl.pallas_call(
        _arch21_kernel,
        out_shape=jax.ShapeDtypeStruct((1, B), jnp.float32),   # lane-dense output
        in_specs=[vmem, vmem, vmem, smem],
        out_specs=vmem,
        compiler_params=pltpu.CompilerParams(vmem_limit_bytes=vmem_limit),
    )(xT, wslab, cslab, scal)
    return yT.reshape(B, 1)


if __name__ == "__main__":
    B = 16
    params = make_params()
    x = jax.random.uniform(jax.random.PRNGKey(0), (B, 2), jnp.float32, -1.0, 1.0)
    y = jax.jit(arch21_forward)(x, params)
    jax.block_until_ready(y)
    assert y.shape == (B, 1) and y.dtype == jnp.float32
    print("KERNEL_OK")
</pallas_src>

<mosaic_0001>
module attributes {stable_mosaic.version = 11 : i64} {
  func.func @_arch21_kernel(%arg0: memref<2x16xf32, #tpu.memory_space<vmem>>, %arg1: memref<40x32xf32, #tpu.memory_space<vmem>>, %arg2: memref<32x8xf32, #tpu.memory_space<vmem>>, %arg3: memref<8xf32, #tpu.memory_space<smem>>, %arg4: memref<1x16xf32, #tpu.memory_space<vmem>>) attributes {dimension_semantics = [], scalar_prefetch = 0 : i64, scratch_operands = 0 : i64, tpu.core_type = #tpu.core_type<tc>} {
    %c0 = arith.constant 0 : index
    %c0_0 = arith.constant 0 : index
    %0 = vector.load %arg0[%c0, %c0_0] : memref<2x16xf32, #tpu.memory_space<vmem>>, vector<2x16xf32>
    %c0_1 = arith.constant 0 : index
    %c0_2 = arith.constant 0 : index
    %1 = vector.load %arg1[%c0_1, %c0_2] : memref<40x32xf32, #tpu.memory_space<vmem>>, vector<32x32xf32>
    %c32 = arith.constant 32 : index
    %c0_3 = arith.constant 0 : index
    %2 = vector.load %arg1[%c32, %c0_3] : memref<40x32xf32, #tpu.memory_space<vmem>>, vector<1x32xf32>
    %c0_4 = arith.constant 0 : index
    %c0_5 = arith.constant 0 : index
    %3 = vector.load %arg2[%c0_4, %c0_5] : memref<32x8xf32, #tpu.memory_space<vmem>>, vector<32x8xf32>
    %4 = vector.extract_strided_slice %3 {offsets = [0, 0], sizes = [32, 2], strides = [1, 1]} : vector<32x8xf32> to vector<32x2xf32>
    %5 = vector.extract_strided_slice %3 {offsets = [0, 2], sizes = [32, 2], strides = [1, 1]} : vector<32x8xf32> to vector<32x2xf32>
    %6 = vector.extract_strided_slice %3 {offsets = [0, 4], sizes = [32, 2], strides = [1, 1]} : vector<32x8xf32> to vector<32x2xf32>
    %7 = vector.extract_strided_slice %3 {offsets = [0, 6], sizes = [32, 1], strides = [1, 1]} : vector<32x8xf32> to vector<32x1xf32>
    %8 = vector.extract_strided_slice %3 {offsets = [0, 7], sizes = [32, 1], strides = [1, 1]} : vector<32x8xf32> to vector<32x1xf32>
    %c0_6 = arith.constant 0 : index
    %9 = memref.load %arg3[%c0_6] : memref<8xf32, #tpu.memory_space<smem>>
    %c1 = arith.constant 1 : index
    %10 = memref.load %arg3[%c1] : memref<8xf32, #tpu.memory_space<smem>>
    %c2 = arith.constant 2 : index
    %11 = memref.load %arg3[%c2] : memref<8xf32, #tpu.memory_space<smem>>
    %c3 = arith.constant 3 : index
    %12 = memref.load %arg3[%c3] : memref<8xf32, #tpu.memory_space<smem>>
    %c4 = arith.constant 4 : index
    %13 = memref.load %arg3[%c4] : memref<8xf32, #tpu.memory_space<smem>>
    %14 = vector.extract_strided_slice %4 {offsets = [0, 0], sizes = [32, 1], strides = [1, 1]} : vector<32x2xf32> to vector<32x1xf32>
    %15 = vector.extract_strided_slice %0 {offsets = [0, 0], sizes = [1, 16], strides = [1, 1]} : vector<2x16xf32> to vector<1x16xf32>
    %16 = vector.broadcast %14 : vector<32x1xf32> to vector<32x16xf32>
    %17 = vector.broadcast %15 : vector<1x16xf32> to vector<32x16xf32>
    %18 = arith.mulf %16, %17 : vector<32x16xf32>
    %19 = vector.extract_strided_slice %4 {offsets = [0, 1], sizes = [32, 1], strides = [1, 1]} : vector<32x2xf32> to vector<32x1xf32>
    %20 = vector.extract_strided_slice %0 {offsets = [1, 0], sizes = [1, 16], strides = [1, 1]} : vector<2x16xf32> to vector<1x16xf32>
    %21 = vector.broadcast %19 : vector<32x1xf32> to vector<32x16xf32>
    %22 = vector.broadcast %20 : vector<1x16xf32> to vector<32x16xf32>
    %23 = arith.mulf %21, %22 : vector<32x16xf32>
    %24 = arith.addf %18, %23 : vector<32x16xf32>
    %25 = vector.extract_strided_slice %5 {offsets = [0, 0], sizes = [32, 1], strides = [1, 1]} : vector<32x2xf32> to vector<32x1xf32>
    %26 = vector.broadcast %25 : vector<32x1xf32> to vector<32x16xf32>
    %27 = arith.addf %24, %26 : vector<32x16xf32>
    %cst = arith.constant 0.000000e+00 : f32
    %28 = vector.broadcast %cst : f32 to vector<32x16xf32>
    %29 = arith.maximumf %27, %28 : vector<32x16xf32>
    %cst_7 = arith.constant dense<0.000000e+00> : vector<32x16xf32>
    %30 = tpu.matmul %1, %29, %cst_7 {dimension_numbers = #tpu.dot_dimension_numbers<[1], [0], [0], [1], [0, 0, 1, 1], [], []>} : vector<32x32xf32>, vector<32x16xf32>, vector<32x16xf32> -> vector<32x16xf32>
    %31 = vector.broadcast %8 : vector<32x1xf32> to vector<32x16xf32>
    %32 = arith.addf %30, %31 : vector<32x16xf32>
    %cst_8 = arith.constant 0.000000e+00 : f32
    %33 = vector.broadcast %cst_8 : f32 to vector<32x16xf32>
    %34 = arith.maximumf %32, %33 : vector<32x16xf32>
    %cst_9 = arith.constant dense<0.000000e+00> : vector<1x16xf32>
    %35 = tpu.matmul %2, %34, %cst_9 {dimension_numbers = #tpu.dot_dimension_numbers<[1], [0], [0], [1], [0, 0, 1, 1], [], []>} : vector<1x32xf32>, vector<32x16xf32>, vector<1x16xf32> -> vector<1x16xf32>
    %36 = vector.extract_strided_slice %5 {offsets = [0, 1], sizes = [32, 1], strides = [1, 1]} : vector<32x2xf32> to vector<32x1xf32>
    %37 = vector.broadcast %36 : vector<32x1xf32> to vector<32x16xf32>
    %38 = arith.addf %24, %37 : vector<32x16xf32>
    %cst_10 = arith.constant 0.000000e+00 : f32
    %39 = vector.broadcast %cst_10 : f32 to vector<32x16xf32>
    %40 = arith.maximumf %38, %39 : vector<32x16xf32>
    %cst_11 = arith.constant dense<0.000000e+00> : vector<32x16xf32>
    %41 = tpu.matmul %1, %40, %cst_11 {dimension_numbers = #tpu.dot_dimension_numbers<[1], [0], [0], [1], [0, 0, 1, 1], [], []>} : vector<32x32xf32>, vector<32x16xf32>, vector<32x16xf32> -> vector<32x16xf32>
    %42 = vector.broadcast %8 : vector<32x1xf32> to vector<32x16xf32>
    %43 = arith.addf %41, %42 : vector<32x16xf32>
    %cst_12 = arith.constant 0.000000e+00 : f32
    %44 = vector.broadcast %cst_12 : f32 to vector<32x16xf32>
    %45 = arith.maximumf %43, %44 : vector<32x16xf32>
    %cst_13 = arith.constant dense<0.000000e+00> : vector<1x16xf32>
    %46 = tpu.matmul %2, %45, %cst_13 {dimension_numbers = #tpu.dot_dimension_numbers<[1], [0], [0], [1], [0, 0, 1, 1], [], []>} : vector<1x32xf32>, vector<32x16xf32>, vector<1x16xf32> -> vector<1x16xf32>
    %cst_14 = arith.constant dense<0.000000e+00> : vector<1xf32>
    %47 = vector.multi_reduction <add>, %35, %cst_14 [1] : vector<1x16xf32> to vector<1xf32>
    %48 = vector.shape_cast %47 : vector<1xf32> to vector<1x1xf32>
    %cst_15 = arith.constant 1.600000e+01 : f32
    %49 = vector.broadcast %cst_15 : f32 to vector<1x1xf32>
    %50 = arith.divf %48, %49 : vector<1x1xf32>
    %51 = vector.broadcast %50 : vector<1x1xf32> to vector<1x16xf32>
    %52 = arith.subf %35, %51 : vector<1x16xf32>
    %53 = arith.mulf %52, %52 : vector<1x16xf32>
    %cst_16 = arith.constant dense<0.000000e+00> : vector<1xf32>
    %54 = vector.multi_reduction <add>, %53, %cst_16 [1] : vector<1x16xf32> to vector<1xf32>
    %55 = vector.shape_cast %54 : vector<1xf32> to vector<1x1xf32>
    %cst_17 = arith.constant 1.600000e+01 : f32
    %56 = vector.broadcast %cst_17 : f32 to vector<1x1xf32>
    %57 = arith.divf %55, %56 : vector<1x1xf32>
    %cst_18 = arith.constant 9.99999974E-6 : f32
    %58 = vector.broadcast %cst_18 : f32 to vector<1x1xf32>
    %59 = arith.addf %57, %58 : vector<1x1xf32>
    %60 = math.rsqrt %59 : vector<1x1xf32>
    %61 = vector.broadcast %9 : f32 to vector<1x1xf32>
    %62 = arith.mulf %61, %60 : vector<1x1xf32>
    %63 = vector.broadcast %62 : vector<1x1xf32> to vector<1x16xf32>
    %64 = arith.mulf %52, %63 : vector<1x16xf32>
    %65 = vector.broadcast %11 : f32 to vector<1x16xf32>
    %66 = arith.addf %64, %65 : vector<1x16xf32>
    %67 = arith.negf %66 : vector<1x16xf32>
    %68 = math.exp %67 : vector<1x16xf32>
    %cst_19 = arith.constant 1.000000e+00 : f32
    %69 = vector.broadcast %cst_19 : f32 to vector<1x16xf32>
    %70 = arith.addf %69, %68 : vector<1x16xf32>
    %71 = arith.divf %69, %70 : vector<1x16xf32>
    %cst_20 = arith.constant dense<0.000000e+00> : vector<1xf32>
    %72 = vector.multi_reduction <add>, %46, %cst_20 [1] : vector<1x16xf32> to vector<1xf32>
    %73 = vector.shape_cast %72 : vector<1xf32> to vector<1x1xf32>
    %cst_21 = arith.constant 1.600000e+01 : f32
    %74 = vector.broadcast %cst_21 : f32 to vector<1x1xf32>
    %75 = arith.divf %73, %74 : vector<1x1xf32>
    %76 = vector.broadcast %75 : vector<1x1xf32> to vector<1x16xf32>
    %77 = arith.subf %46, %76 : vector<1x16xf32>
    %78 = arith.mulf %77, %77 : vector<1x16xf32>
    %cst_22 = arith.constant dense<0.000000e+00> : vector<1xf32>
    %79 = vector.multi_reduction <add>, %78, %cst_22 [1] : vector<1x16xf32> to vector<1xf32>
    %80 = vector.shape_cast %79 : vector<1xf32> to vector<1x1xf32>
    %cst_23 = arith.constant 1.600000e+01 : f32
    %81 = vector.broadcast %cst_23 : f32 to vector<1x1xf32>
    %82 = arith.divf %80, %81 : vector<1x1xf32>
    %cst_24 = arith.constant 9.99999974E-6 : f32
    %83 = vector.broadcast %cst_24 : f32 to vector<1x1xf32>
    %84 = arith.addf %82, %83 : vector<1x1xf32>
    %85 = math.rsqrt %84 : vector<1x1xf32>
    %86 = vector.broadcast %10 : f32 to vector<1x1xf32>
    %87 = arith.mulf %86, %85 : vector<1x1xf32>
    %88 = vector.broadcast %87 : vector<1x1xf32> to vector<1x16xf32>
    %89 = arith.mulf %77, %88 : vector<1x16xf32>
    %90 = vector.broadcast %12 : f32 to vector<1x16xf32>
    %91 = arith.addf %89, %90 : vector<1x16xf32>
    %92 = arith.negf %91 : vector<1x16xf32>
    %93 = math.exp %92 : vector<1x16xf32>
    %cst_25 = arith.constant 1.000000e+00 : f32
    %94 = vector.broadcast %cst_25 : f32 to vector<1x16xf32>
    %95 = arith.addf %94, %93 : vector<1x16xf32>
    %96 = arith.divf %94, %95 : vector<1x16xf32>
    %97 = vector.extract_strided_slice %6 {offsets = [0, 0], sizes = [32, 1], strides = [1, 1]} : vector<32x2xf32> to vector<32x1xf32>
    %98 = vector.broadcast %97 : vector<32x1xf32> to vector<32x16xf32>
    %99 = vector.broadcast %71 : vector<1x16xf32> to vector<32x16xf32>
    %100 = arith.mulf %98, %99 : vector<32x16xf32>
    %101 = vector.extract_strided_slice %6 {offsets = [0, 1], sizes = [32, 1], strides = [1, 1]} : vector<32x2xf32> to vector<32x1xf32>
    %102 = vector.broadcast %101 : vector<32x1xf32> to vector<32x16xf32>
    %103 = vector.broadcast %96 : vector<1x16xf32> to vector<32x16xf32>
    %104 = arith.mulf %102, %103 : vector<32x16xf32>
    %105 = arith.addf %100, %104 : vector<32x16xf32>
    %106 = vector.broadcast %7 : vector<32x1xf32> to vector<32x16xf32>
    %107 = arith.addf %105, %106 : vector<32x16xf32>
    %cst_26 = arith.constant 0.000000e+00 : f32
    %108 = vector.broadcast %cst_26 : f32 to vector<32x16xf32>
    %109 = arith.maximumf %107, %108 : vector<32x16xf32>
    %cst_27 = arith.constant dense<0.000000e+00> : vector<32x16xf32>
    %110 = tpu.matmul %1, %109, %cst_27 {dimension_numbers = #tpu.dot_dimension_numbers<[1], [0], [0], [1], [0, 0, 1, 1], [], []>} : vector<32x32xf32>, vector<32x16xf32>, vector<32x16xf32> -> vector<32x16xf32>
    %111 = vector.broadcast %8 : vector<32x1xf32> to vector<32x16xf32>
    %112 = arith.addf %110, %111 : vector<32x16xf32>
    %cst_28 = arith.constant 0.000000e+00 : f32
    %113 = vector.broadcast %cst_28 : f32 to vector<32x16xf32>
    %114 = arith.maximumf %112, %113 : vector<32x16xf32>
    %cst_29 = arith.constant dense<0.000000e+00> : vector<1x16xf32>
    %115 = tpu.matmul %2, %114, %cst_29 {dimension_numbers = #tpu.dot_dimension_numbers<[1], [0], [0], [1], [0, 0, 1, 1], [], []>} : vector<1x32xf32>, vector<32x16xf32>, vector<1x16xf32> -> vector<1x16xf32>
    %116 = vector.broadcast %13 : f32 to vector<1x16xf32>
    %117 = arith.addf %115, %116 : vector<1x16xf32>
    %c0_30 = arith.constant 0 : index
    %c0_31 = arith.constant 0 : index
    %118 = vector.load %arg4[%c0_30, %c0_31] : memref<1x16xf32, #tpu.memory_space<vmem>>, vector<1x16xf32>
    tpu.vector_store %arg4[%c0_30, %c0_31], %117 {strides = array<i32>} : memref<1x16xf32, #tpu.memory_space<vmem>>, vector<1x16xf32>,
    return
  }
}

</mosaic_0001>

<llo_original>
// kernel: arch21_forward.1
$region0: #{arch21_forward.1}
  #allocation0 [shape = 'u32[]', space=smem, size = 0x4, offset = 0x4, fixed_abs, tag = 'smem constant byte address 0x4 - core index']
  #allocation1 [shape = 'u32[144,128]{1,0:T(1,128)}', space=vmem, size = 0x12000, scoped, tag = 'internal scratch']
  %s0 = inlined_call_operand.vmem [shape: f32[2,16], index: 0, kind: input, shape index: {}]
  %s1 = inlined_call_operand.vmem [shape: f32[40,32], index: 1, kind: input, shape index: {}]
  %s2 = inlined_call_operand.vmem [shape: f32[32,8], index: 2, kind: input, shape index: {}]
  %s3 = inlined_call_operand.vmem [shape: f32[8], index: 3, kind: input, shape index: {}]
  %s4 = inlined_call_operand.hbm [shape: f32[1,16], index: 4, kind: output, shape index: {}]
  %s5 = sld [smem:[#allocation0]]
  $region30: #{arch21_forward.1} parent=0
    _
  %s7 = ssub.s32 1, %s5
  %s8 = scalar_select 0, %s7, %s5
  $region1: #{arch21_forward.1} parent=0
    #allocation2 [shape = 'u8[512]{0}', space=smem, size = 0x200, scoped, tag = 'input window, operand 3, single buffered']
    #allocation3 [shape = 's32[1]{0}', space=sflag, size = 0x4, scoped, tag = 'scoped memory for arch21_forward.1']
    #allocation4 [shape = 's32[1]{0}', space=sflag, size = 0x4, scoped, tag = 'scoped memory for arch21_forward.1']
    #allocation5 [shape = 'u8[512]{0}', space=vmem, size = 0x400, scoped, tag = 'output window, operand 0, single buffered']
    %9 = vsyncpa [#allocation4], 0
    %10 = vsyncpa [#allocation3], 0
    // Predicated region
    $region2: #{arch21_forward.1} parent=1 // pred_check
      _
    $region3: #{arch21_forward.1} parent=1 // pred_check_branch
      %12 = sbr.rel (0) target = $region5
    $region4: #{arch21_forward.1} parent=1 // pred_region
      _
    $region5: #{arch21_forward.1} parent=1 // pred_fallthru
      _
    // Predicated region
    $region6: #{arch21_forward.1} parent=1 // pred_check
      _
    $region7: #{arch21_forward.1} parent=1 // pred_check_branch
      %14 = sbr.rel (0) target = $region9
    $region8: #{arch21_forward.1} parent=1 // pred_region
      _
    $region9: #{arch21_forward.1} parent=1 // pred_fallthru
      _
    // Predicated region
    $region10: #{arch21_forward.1} parent=1 // pred_check
      _
    $region11: #{arch21_forward.1} parent=1 // pred_check_branch
      %16 = sbr.rel (0) target = $region13
    $region12: #{arch21_forward.1} parent=1 // pred_region
      _
    $region13: #{arch21_forward.1} parent=1 // pred_fallthru
      _
    // Predicated region
    $region14: #{arch21_forward.1} parent=1 // pred_check
      _
    $region15: #{arch21_forward.1} parent=1 // pred_check_branch
      %18 = sbr.rel (0) target = $region17
    $region16: #{arch21_forward.1} parent=1 // pred_region
      %s20 = ssub.s32 16, 16
      %21 = vsyncadd [#allocation4], %s20
      %s23 = sshll.u32 %s3, 4
      %s24 = int_to_ptr.vmem [resolvable:$true] %s23
      %26 = dma.vmem_to_smem %s24, 16, [#allocation2], [#allocation4]
    $region17: #{arch21_forward.1} parent=1 // pred_fallthru
      _
    // Predicated region
    $region18: #{arch21_forward.1} parent=1 // pred_check
      _
    $region19: #{arch21_forward.1} parent=1 // pred_check_branch
      %28 = sbr.rel (0) target = $region21
    $region20: #{arch21_forward.1} parent=1 // pred_region
      %29 = dma.done [#allocation4], 16
    $region21: #{arch21_forward.1} parent=1 // pred_fallthru
      _
    %30 = sfence
    %v31 = vld [vmem:[%s0] sm:$0x3]
    %v32 = vld [vmem:[%s1] sm:$0xff]
    %v33 = vld [vmem:[%s1 + $0x8] sm:$0xff]
    %v34 = vld [vmem:[%s1 + $0x10] sm:$0xff]
    %v35 = vld [vmem:[%s1 + $0x18] sm:$0xff]
    %v36 = vld [vmem:[%s1 + $0x20] sm:$0x1]
    %v37 = vld [vmem:[%s2] sm:$0xff]
    %v38 = vld [vmem:[%s2 + $0x8] sm:$0xff]
    %v39 = vld [vmem:[%s2 + $0x10] sm:$0xff]
    %v40 = vld [vmem:[%s2 + $0x18] sm:$0xff]
    %s41 = sld [smem:[#allocation2]]
    %s42 = sld [smem:[#allocation2 + $0x1]]
    %s43 = sld [smem:[#allocation2 + $0x2]]
    %s44 = sld [smem:[#allocation2 + $0x3]]
    %s45 = sld [smem:[#allocation2 + $0x4]]
    %47 = vset.pattern.permute.xlu0 0
    %48 = vperm.xlu0 %47, %v37
    %v49 = vpop.permute.xlu0 %48
    %52 = vset.pattern.permute.xlu0 0
    %53 = vperm.xlu0 %52, %v38
    %v54 = vpop.permute.xlu0 %53
    %57 = vset.pattern.permute.xlu0 0
    %58 = vperm.xlu0 %57, %v39
    %v59 = vpop.permute.xlu0 %58
    %62 = vset.pattern.permute.xlu0 0
    %63 = vperm.xlu0 %62, %v40
    %v64 = vpop.permute.xlu0 %63
    %v66 = vlaneseq
    %v67 = vshrl.u32 %v66, 7
    %v68 = vsub.s32 0, %v67
    %v69 = vrot.slane %v31, %v68
    %v70 = vmul.f32 %v49, %v69
    %v71 = vmul.f32 %v54, %v69
    %v72 = vmul.f32 %v59, %v69
    %v73 = vmul.f32 %v64, %v69
    %74 = vset.pattern.permute.xlu0 1
    %75 = vperm.xlu0 %74, %v37
    %v76 = vpop.permute.xlu0 %75
    %78 = vset.pattern.permute.xlu0 1
    %79 = vperm.xlu0 %78, %v38
    %v80 = vpop.permute.xlu0 %79
    %82 = vset.pattern.permute.xlu0 1
    %83 = vperm.xlu0 %82, %v39
    %v84 = vpop.permute.xlu0 %83
    %86 = vset.pattern.permute.xlu0 1
    %87 = vperm.xlu0 %86, %v40
    %v88 = vpop.permute.xlu0 %87
    %v90 = vlaneseq
    %v91 = vshrl.u32 %v90, 7
    %v92 = vsub.s32 1, %v91
    %v93 = vrot.slane %v31, %v92
    %v94 = vmul.f32 %v76, %v93
    %v95 = vmul.f32 %v80, %v93
    %v96 = vmul.f32 %v84, %v93
    %v97 = vmul.f32 %v88, %v93
    %v98 = vadd.f32 %v70, %v94
    %v99 = vadd.f32 %v71, %v95
    %v100 = vadd.f32 %v72, %v96
    %v101 = vadd.f32 %v73, %v97
    %102 = vset.pattern.permute.xlu0 2
    %103 = vperm.xlu0 %102, %v37
    %v104 = vpop.permute.xlu0 %103
    %106 = vset.pattern.permute.xlu0 2
    %107 = vperm.xlu0 %106, %v38
    %v108 = vpop.permute.xlu0 %107
    %110 = vset.pattern.permute.xlu0 2
    %111 = vperm.xlu0 %110, %v39
    %v112 = vpop.permute.xlu0 %111
    %114 = vset.pattern.permute.xlu0 2
    %115 = vperm.xlu0 %114, %v40
    %v116 = vpop.permute.xlu0 %115
    %v118 = vadd.f32 %v98, %v104
    %v119 = vadd.f32 %v99, %v108
    %v120 = vadd.f32 %v100, %v112
    %v121 = vadd.f32 %v101, %v116
    %v122 = vmax.f32 %v118, 0.0
    %v123 = vmax.f32 %v119, 0.0
    %v124 = vmax.f32 %v120, 0.0
    %v125 = vmax.f32 %v121, 0.0
    %126 = vset.pattern.permute.xlu0 7
    %127 = vperm.xlu0 %126, %v37
    %v128 = vpop.permute.xlu0 %127
    %130 = vset.pattern.permute.xlu0 7
    %131 = vperm.xlu0 %130, %v38
    %v132 = vpop.permute.xlu0 %131
    %134 = vset.pattern.permute.xlu0 7
    %135 = vperm.xlu0 %134, %v39
    %v136 = vpop.permute.xlu0 %135
    %138 = vset.pattern.permute.xlu0 7
    %139 = vperm.xlu0 %138, %v40
    %v140 = vpop.permute.xlu0 %139
    %vm142 = vcmask 261120
    %v144 = vsel %vm142, %v32, 0
    %v147 = vsel %vm142, %v33, 0
    %v150 = vsel %vm142, %v34, 0
    %v153 = vsel %vm142, %v35, 0
    %155 = vmatprep.subr.mxu0 0.0
    %156 = vmatpush1.msra.mxu0 %v122
    %157 = vmatprep.subr.mxu0 0.0
    %158 = vmatpush1.msra.mxu0 %v123
    %159 = vmatprep.subr.mxu0 0.0
    %160 = vmatpush1.msra.mxu0 %v124
    %161 = vmatprep.subr.mxu0 0.0
    %162 = vmatpush1.msra.mxu0 %v125
    %163 = vmatprep.subr.mxu0 0.0
    %164 = vmatpush1.msra.mxu0 0.0
    %165 = vmatprep.subr.mxu0 0.0
    %166 = vmatpush1.msra.mxu0 0.0
    %167 = vmatprep.subr.mxu0 0.0
    %168 = vmatpush1.msra.mxu0 0.0
    %169 = vmatprep.subr.mxu0 0.0
    %170 = vmatpush1.msra.mxu0 0.0
    %171 = vmatprep.subr.mxu0 0.0
    %172 = vmatpush1.msra.mxu0 0.0
    %173 = vmatprep.subr.mxu0 0.0
    %174 = vmatpush1.msra.mxu0 0.0
    %175 = vmatprep.subr.mxu0 0.0
    %176 = vmatpush1.msra.mxu0 0.0
    %177 = vmatprep.subr.mxu0 0.0
    %178 = vmatpush1.msra.mxu0 0.0
    %179 = vmatprep.subr.mxu0 0.0
    %180 = vmatpush1.msra.mxu0 0.0
    %181 = vmatprep.subr.mxu0 0.0
    %182 = vmatpush1.msra.mxu0 0.0
    %183 = vmatprep.subr.mxu0 0.0
    %184 = vmatpush1.msra.mxu0 0.0
    %185 = vmatprep.subr.mxu0 0.0
    %186 = vmatpush1.msra.mxu0 0.0
    %187 = vmatprep.subr.mxu0 0.0
    %188 = vmatpush1.msra.mxu0 0.0
    %189 = vmatprep.subr.mxu0 0.0
    %190 = vmatpush1.msra.mxu0 0.0
    %191 = vmatprep.subr.mxu0 0.0
    %192 = vmatpush1.msra.mxu0 0.0
    %193 = vmatprep.subr.mxu0 0.0
    %194 = vmatpush1.msra.mxu0 0.0
    %195 = vmatprep.subr.mxu0 0.0
    %196 = vmatpush1.msra.mxu0 0.0
    %197 = vmatprep.subr.mxu0 0.0
    %198 = vmatpush1.msra.mxu0 0.0
    %199 = vmatprep.subr.mxu0 0.0
    %200 = vmatpush1.msra.mxu0 0.0
    %201 = vmatprep.subr.mxu0 0.0
    %202 = vmatpush1.msra.mxu0 0.0
    %203 = vmatprep.subr.mxu0 0.0
    %204 = vmatpush1.msra.mxu0 0.0
    %205 = vmatprep.subr.mxu0 0.0
    %206 = vmatpush1.msra.mxu0 0.0
    %207 = vmatprep.subr.mxu0 0.0
    %208 = vmatpush1.msra.mxu0 0.0
    %209 = vmatprep.subr.mxu0 0.0
    %210 = vmatpush1.msra.mxu0 0.0
    %211 = vmatprep.subr.mxu0 0.0
    %212 = vmatpush1.msra.mxu0 0.0
    %213 = vmatprep.subr.mxu0 0.0
    %214 = vmatpush1.msra.mxu0 0.0
    %215 = vmatprep.subr.mxu0 0.0
    %216 = vmatpush1.msra.mxu0 0.0
    %217 = vmatprep.subr.mxu0 0.0
    %218 = vmatpush1.msra.mxu0 0.0
    %219 = vmatprep.mubr.f32.mxu0 0.0
    %220 = vmatmul.mubr.f32.gmra.mrb[0].mxu0 %v144
    %v221 = vpop.f32.mrb[0].mxu0
    %v222 = vadd.f32 %v128, %v221
    %v223 = vpop.f32.mrb[0].mxu0
    %224 = vmatprep.mubr.f32.mxu0 0.0
    %225 = vmatmul.mubr.f32.gmra.mrb[0].mxu0 %v147
    %v226 = vpop.f32.mrb[0].mxu0
    %v227 = vadd.f32 %v132, %v226
    %v228 = vpop.f32.mrb[0].mxu0
    %229 = vmatprep.mubr.f32.mxu0 0.0
    %230 = vmatmul.mubr.f32.gmra.mrb[0].mxu0 %v150
    %v231 = vpop.f32.mrb[0].mxu0
    %v232 = vadd.f32 %v136, %v231
    %v233 = vpop.f32.mrb[0].mxu0
    %234 = vmatprep.mubr.f32.mxu0 0.0
    %235 = vmatmul.mubr.f32.gmra.mrb[0].mxu0 %v153
    %v236 = vpop.f32.mrb[0].mxu0
    %v237 = vadd.f32 %v140, %v236
    %v238 = vpop.f32.mrb[0].mxu0
    %239 = vdwg.mxu0
    %v240 = vmax.f32 %v222, 0.0
    %v241 = vmax.f32 %v227, 0.0
    %v242 = vmax.f32 %v232, 0.0
    %v243 = vmax.f32 %v237, 0.0
    %v245 = vsel %vm142, %v36, 0
    %247 = vmatprep.subr.mxu0 0.0
    %248 = vmatpush1.msra.mxu0 %v240
    %249 = vmatprep.subr.mxu0 0.0
    %250 = vmatpush1.msra.mxu0 %v241
    %251 = vmatprep.subr.mxu0 0.0
    %252 = vmatpush1.msra.mxu0 %v242
    %253 = vmatprep.subr.mxu0 0.0
    %254 = vmatpush1.msra.mxu0 %v243
    %255 = vmatprep.subr.mxu0 0.0
    %256 = vmatpush1.msra.mxu0 0.0
    %257 = vmatprep.subr.mxu0 0.0
    %258 = vmatpush1.msra.mxu0 0.0
    %259 = vmatprep.subr.mxu0 0.0
    %260 = vmatpush1.msra.mxu0 0.0
    %261 = vmatprep.subr.mxu0 0.0
    %262 = vmatpush1.msra.mxu0 0.0
    %263 = vmatprep.subr.mxu0 0.0
    %264 = vmatpush1.msra.mxu0 0.0
    %265 = vmatprep.subr.mxu0 0.0
    %266 = vmatpush1.msra.mxu0 0.0
    %267 = vmatprep.subr.mxu0 0.0
    %268 = vmatpush1.msra.mxu0 0.0
    %269 = vmatprep.subr.mxu0 0.0
    %270 = vmatpush1.msra.mxu0 0.0
    %271 = vmatprep.subr.mxu0 0.0
    %272 = vmatpush1.msra.mxu0 0.0
    %273 = vmatprep.subr.mxu0 0.0
    %274 = vmatpush1.msra.mxu0 0.0
    %275 = vmatprep.subr.mxu0 0.0
    %276 = vmatpush1.msra.mxu0 0.0
    %277 = vmatprep.subr.mxu0 0.0
    %278 = vmatpush1.msra.mxu0 0.0
    %279 = vmatprep.subr.mxu0 0.0
    %280 = vmatpush1.msra.mxu0 0.0
    %281 = vmatprep.subr.mxu0 0.0
    %282 = vmatpush1.msra.mxu0 0.0
    %283 = vmatprep.subr.mxu0 0.0
    %284 = vmatpush1.msra.mxu0 0.0
    %285 = vmatprep.subr.mxu0 0.0
    %286 = vmatpush1.msra.mxu0 0.0
    %287 = vmatprep.subr.mxu0 0.0
    %288 = vmatpush1.msra.mxu0 0.0
    %289 = vmatprep.subr.mxu0 0.0
    %290 = vmatpush1.msra.mxu0 0.0
    %291 = vmatprep.subr.mxu0 0.0
    %292 = vmatpush1.msra.mxu0 0.0
    %293 = vmatprep.subr.mxu0 0.0
    %294 = vmatpush1.msra.mxu0 0.0
    %295 = vmatprep.subr.mxu0 0.0
    %296 = vmatpush1.msra.mxu0 0.0
    %297 = vmatprep.subr.mxu0 0.0
    %298 = vmatpush1.msra.mxu0 0.0
    %299 = vmatprep.subr.mxu0 0.0
    %300 = vmatpush1.msra.mxu0 0.0
    %301 = vmatprep.subr.mxu0 0.0
    %302 = vmatpush1.msra.mxu0 0.0
    %303 = vmatprep.subr.mxu0 0.0
    %304 = vmatpush1.msra.mxu0 0.0
    %305 = vmatprep.subr.mxu0 0.0
    %306 = vmatpush1.msra.mxu0 0.0
    %307 = vmatprep.subr.mxu0 0.0
    %308 = vmatpush1.msra.mxu0 0.0
    %309 = vmatprep.subr.mxu0 0.0
    %310 = vmatpush1.msra.mxu0 0.0
    %311 = vmatprep.mubr.f32.mxu0 0.0
    %312 = vmatmul.mubr.f32.gmra.mrb[0].mxu0 %v245
    %v313 = vpop.f32.mrb[0].mxu0
    %v314 = vadd.f32 0.0, %v313
    %v315 = vpop.f32.mrb[0].mxu0
    %316 = vdwg.mxu0
    %317 = vset.pattern.permute.xlu0 3
    %318 = vperm.xlu0 %317, %v37
    %v319 = vpop.permute.xlu0 %318
    %321 = vset.pattern.permute.xlu0 3
    %322 = vperm.xlu0 %321, %v38
    %v323 = vpop.permute.xlu0 %322
    %325 = vset.pattern.permute.xlu0 3
    %326 = vperm.xlu0 %325, %v39
    %v327 = vpop.permute.xlu0 %326
    %329 = vset.pattern.permute.xlu0 3
    %330 = vperm.xlu0 %329, %v40
    %v331 = vpop.permute.xlu0 %330
    %v333 = vadd.f32 %v98, %v319
    %v334 = vadd.f32 %v99, %v323
    %v335 = vadd.f32 %v100, %v327
    %v336 = vadd.f32 %v101, %v331
    %v337 = vmax.f32 %v333, 0.0
    %v338 = vmax.f32 %v334, 0.0
    %v339 = vmax.f32 %v335, 0.0
    %v340 = vmax.f32 %v336, 0.0
    %341 = vmatprep.subr.mxu0 0.0
    %342 = vmatpush1.msra.mxu0 %v337
    %343 = vmatprep.subr.mxu0 0.0
    %344 = vmatpush1.msra.mxu0 %v338
    %345 = vmatprep.subr.mxu0 0.0
    %346 = vmatpush1.msra.mxu0 %v339
    %347 = vmatprep.subr.mxu0 0.0
    %348 = vmatpush1.msra.mxu0 %v340
    %349 = vmatprep.subr.mxu0 0.0
    %350 = vmatpush1.msra.mxu0 0.0
    %351 = vmatprep.subr.mxu0 0.0
    %352 = vmatpush1.msra.mxu0 0.0
    %353 = vmatprep.subr.mxu0 0.0
    %354 = vmatpush1.msra.mxu0 0.0
    %355 = vmatprep.subr.mxu0 0.0
    %356 = vmatpush1.msra.mxu0 0.0
    %357 = vmatprep.subr.mxu0 0.0
    %358 = vmatpush1.msra.mxu0 0.0
    %359 = vmatprep.subr.mxu0 0.0
    %360 = vmatpush1.msra.mxu0 0.0
    %361 = vmatprep.subr.mxu0 0.0
    %362 = vmatpush1.msra.mxu0 0.0
    %363 = vmatprep.subr.mxu0 0.0
    %364 = vmatpush1.msra.mxu0 0.0
    %365 = vmatprep.subr.mxu0 0.0
    %366 = vmatpush1.msra.mxu0 0.0
    %367 = vmatprep.subr.mxu0 0.0
    %368 = vmatpush1.msra.mxu0 0.0
    %369 = vmatprep.subr.mxu0 0.0
    %370 = vmatpush1.msra.mxu0 0.0
    %371 = vmatprep.subr.mxu0 0.0
    %372 = vmatpush1.msra.mxu0 0.0
    %373 = vmatprep.subr.mxu0 0.0
    %374 = vmatpush1.msra.mxu0 0.0
    %375 = vmatprep.subr.mxu0 0.0
    %376 = vmatpush1.msra.mxu0 0.0
    %377 = vmatprep.subr.mxu0 0.0
    %378 = vmatpush1.msra.mxu0 0.0
    %379 = vmatprep.subr.mxu0 0.0
    %380 = vmatpush1.msra.mxu0 0.0
    %381 = vmatprep.subr.mxu0 0.0
    %382 = vmatpush1.msra.mxu0 0.0
    %383 = vmatprep.subr.mxu0 0.0
    %384 = vmatpush1.msra.mxu0 0.0
    %385 = vmatprep.subr.mxu0 0.0
    %386 = vmatpush1.msra.mxu0 0.0
    %387 = vmatprep.subr.mxu0 0.0
    %388 = vmatpush1.msra.mxu0 0.0
    %389 = vmatprep.subr.mxu0 0.0
    %390 = vmatpush1.msra.mxu0 0.0
    %391 = vmatprep.subr.mxu0 0.0
    %392 = vmatpush1.msra.mxu0 0.0
    %393 = vmatprep.subr.mxu0 0.0
    %394 = vmatpush1.msra.mxu0 0.0
    %395 = vmatprep.subr.mxu0 0.0
    %396 = vmatpush1.msra.mxu0 0.0
    %397 = vmatprep.subr.mxu0 0.0
    %398 = vmatpush1.msra.mxu0 0.0
    %399 = vmatprep.subr.mxu0 0.0
    %400 = vmatpush1.msra.mxu0 0.0
    %401 = vmatprep.subr.mxu0 0.0
    %402 = vmatpush1.msra.mxu0 0.0
    %403 = vmatprep.subr.mxu0 0.0
    %404 = vmatpush1.msra.mxu0 0.0
    %405 = vmatprep.mubr.f32.mxu0 0.0
    %406 = vmatmul.mubr.f32.gmra.mrb[0].mxu0 %v144
    %v407 = vpop.f32.mrb[0].mxu0
    %v408 = vadd.f32 %v128, %v407
    %v409 = vpop.f32.mrb[0].mxu0
    %410 = vmatprep.mubr.f32.mxu0 0.0
    %411 = vmatmul.mubr.f32.gmra.mrb[0].mxu0 %v147
    %v412 = vpop.f32.mrb[0].mxu0
    %v413 = vadd.f32 %v132, %v412
    %v414 = vpop.f32.mrb[0].mxu0
    %415 = vmatprep.mubr.f32.mxu0 0.0
    %416 = vmatmul.mubr.f32.gmra.mrb[0].mxu0 %v150
    %v417 = vpop.f32.mrb[0].mxu0
    %v418 = vadd.f32 %v136, %v417
    %v419 = vpop.f32.mrb[0].mxu0
    %420 = vmatprep.mubr.f32.mxu0 0.0
    %421 = vmatmul.mubr.f32.gmra.mrb[0].mxu0 %v153
    %v422 = vpop.f32.mrb[0].mxu0
    %v423 = vadd.f32 %v140, %v422
    %v424 = vpop.f32.mrb[0].mxu0
    %425 = vdwg.mxu0
    %v426 = vmax.f32 %v408, 0.0
    %v427 = vmax.f32 %v413, 0.0
    %v428 = vmax.f32 %v418, 0.0
    %v429 = vmax.f32 %v423, 0.0
    %430 = vmatprep.subr.mxu0 0.0
    %431 = vmatpush1.msra.mxu0 %v426
    %432 = vmatprep.subr.mxu0 0.0
    %433 = vmatpush1.msra.mxu0 %v427
    %434 = vmatprep.subr.mxu0 0.0
    %435 = vmatpush1.msra.mxu0 %v428
    %436 = vmatprep.subr.mxu0 0.0
    %437 = vmatpush1.msra.mxu0 %v429
    %438 = vmatprep.subr.mxu0 0.0
    %439 = vmatpush1.msra.mxu0 0.0
    %440 = vmatprep.subr.mxu0 0.0
    %441 = vmatpush1.msra.mxu0 0.0
    %442 = vmatprep.subr.mxu0 0.0
    %443 = vmatpush1.msra.mxu0 0.0
    %444 = vmatprep.subr.mxu0 0.0
    %445 = vmatpush1.msra.mxu0 0.0
    %446 = vmatprep.subr.mxu0 0.0
    %447 = vmatpush1.msra.mxu0 0.0
    %448 = vmatprep.subr.mxu0 0.0
    %449 = vmatpush1.msra.mxu0 0.0
    %450 = vmatprep.subr.mxu0 0.0
    %451 = vmatpush1.msra.mxu0 0.0
    %452 = vmatprep.subr.mxu0 0.0
    %453 = vmatpush1.msra.mxu0 0.0
    %454 = vmatprep.subr.mxu0 0.0
    %455 = vmatpush1.msra.mxu0 0.0
    %456 = vmatprep.subr.mxu0 0.0
    %457 = vmatpush1.msra.mxu0 0.0
    %458 = vmatprep.subr.mxu0 0.0
    %459 = vmatpush1.msra.mxu0 0.0
    %460 = vmatprep.subr.mxu0 0.0
    %461 = vmatpush1.msra.mxu0 0.0
    %462 = vmatprep.subr.mxu0 0.0
    %463 = vmatpush1.msra.mxu0 0.0
    %464 = vmatprep.subr.mxu0 0.0
    %465 = vmatpush1.msra.mxu0 0.0
    %466 = vmatprep.subr.mxu0 0.0
    %467 = vmatpush1.msra.mxu0 0.0
    %468 = vmatprep.subr.mxu0 0.0
    %469 = vmatpush1.msra.mxu0 0.0
    %470 = vmatprep.subr.mxu0 0.0
    %471 = vmatpush1.msra.mxu0 0.0
    %472 = vmatprep.subr.mxu0 0.0
    %473 = vmatpush1.msra.mxu0 0.0
    %474 = vmatprep.subr.mxu0 0.0
    %475 = vmatpush1.msra.mxu0 0.0
    %476 = vmatprep.subr.mxu0 0.0
    %477 = vmatpush1.msra.mxu0 0.0
    %478 = vmatprep.subr.mxu0 0.0
    %479 = vmatpush1.msra.mxu0 0.0
    %480 = vmatprep.subr.mxu0 0.0
    %481 = vmatpush1.msra.mxu0 0.0
    %482 = vmatprep.subr.mxu0 0.0
    %483 = vmatpush1.msra.mxu0 0.0
    %484 = vmatprep.subr.mxu0 0.0
    %485 = vmatpush1.msra.mxu0 0.0
    %486 = vmatprep.subr.mxu0 0.0
    %487 = vmatpush1.msra.mxu0 0.0
    %488 = vmatprep.subr.mxu0 0.0
    %489 = vmatpush1.msra.mxu0 0.0
    %490 = vmatprep.subr.mxu0 0.0
    %491 = vmatpush1.msra.mxu0 0.0
    %492 = vmatprep.subr.mxu0 0.0
    %493 = vmatpush1.msra.mxu0 0.0
    %494 = vmatprep.mubr.f32.mxu0 0.0
    %495 = vmatmul.mubr.f32.gmra.mrb[0].mxu0 %v245
    %v496 = vpop.f32.mrb[0].mxu0
    %v497 = vadd.f32 0.0, %v496
    %v498 = vpop.f32.mrb[0].mxu0
    %499 = vdwg.mxu0
    %vm500 = vcmask 122880
    %v501 = vsel %vm500, %v314, 0.0
    %502 = vadd.xlane.f32.xlu0 %v501
    %v503 = vpop.xlane.xlu0 %502
    %v504 = vrcp.pop 16.0
    %v505 = vmul.f32 %v503, %v504
    %v506 = vsub.f32 %v314, %v505
    %v507 = vmul.f32 %v506, %v506
    %v508 = vsel %vm500, %v507, 0.0
    %509 = vadd.xlane.f32.xlu0 %v508
    %v510 = vpop.xlane.xlu0 %509
    %v511 = vmul.f32 %v510, %v504
    %v512 = vadd.f32 %v511, 1e-05
    %v513 = vrsqrt.pop %v512
    %v514 = vstv %s41
    %v515 = vmul.f32 %v514, %v513
    %v516 = vmul.f32 %v506, %v515
    %v517 = vstv %s43
    %v518 = vadd.f32 %v516, %v517
    %v519 = vxor.u32 %v518, 2147483648
    %v520 = vmul.f32 %v519, 1.442695
    %v521 = vpow.pop %v520
    %v522 = vadd.f32 %v521, 1.0
    %v523 = vrcp.pop %v522
    %v524 = vmul.f32 1.0, %v523
    %v525 = vsel %vm500, %v497, 0.0
    %526 = vadd.xlane.f32.xlu0 %v525
    %v527 = vpop.xlane.xlu0 %526
    %v528 = vmul.f32 %v527, %v504
    %v529 = vsub.f32 %v497, %v528
    %v530 = vmul.f32 %v529, %v529
    %v531 = vsel %vm500, %v530, 0.0
    %532 = vadd.xlane.f32.xlu0 %v531
    %v533 = vpop.xlane.xlu0 %532
    %v534 = vmul.f32 %v533, %v504
    %v535 = vadd.f32 %v534, 1e-05
    %v536 = vrsqrt.pop %v535
    %v537 = vstv %s42
    %v538 = vmul.f32 %v537, %v536
    %v539 = vmul.f32 %v529, %v538
    %v540 = vstv %s44
    %v541 = vadd.f32 %v539, %v540
    %v542 = vxor.u32 %v541, 2147483648
    %v543 = vmul.f32 %v542, 1.442695
    %v544 = vpow.pop %v543
    %v545 = vadd.f32 %v544, 1.0
    %v546 = vrcp.pop %v545
    %v547 = vmul.f32 1.0, %v546
    %548 = vset.pattern.permute.xlu0 4
    %549 = vperm.xlu0 %548, %v37
    %v550 = vpop.permute.xlu0 %549
    %552 = vset.pattern.permute.xlu0 4
    %553 = vperm.xlu0 %552, %v38
    %v554 = vpop.permute.xlu0 %553
    %556 = vset.pattern.permute.xlu0 4
    %557 = vperm.xlu0 %556, %v39
    %v558 = vpop.permute.xlu0 %557
    %560 = vset.pattern.permute.xlu0 4
    %561 = vperm.xlu0 %560, %v40
    %v562 = vpop.permute.xlu0 %561
    %v564 = vlaneseq
    %v565 = vshrl.u32 %v564, 7
    %v566 = vsub.s32 0, %v565
    %v567 = vrot.slane %v524, %v566
    %v568 = vmul.f32 %v550, %v567
    %v569 = vmul.f32 %v554, %v567
    %v570 = vmul.f32 %v558, %v567
    %v571 = vmul.f32 %v562, %v567
    %572 = vset.pattern.permute.xlu0 5
    %573 = vperm.xlu0 %572, %v37
    %v574 = vpop.permute.xlu0 %573
    %576 = vset.pattern.permute.xlu0 5
    %577 = vperm.xlu0 %576, %v38
    %v578 = vpop.permute.xlu0 %577
    %580 = vset.pattern.permute.xlu0 5
    %581 = vperm.xlu0 %580, %v39
    %v582 = vpop.permute.xlu0 %581
    %584 = vset.pattern.permute.xlu0 5
    %585 = vperm.xlu0 %584, %v40
    %v586 = vpop.permute.xlu0 %585
    %v588 = vlaneseq
    %v589 = vshrl.u32 %v588, 7
    %v590 = vsub.s32 0, %v589
    %v591 = vrot.slane %v547, %v590
    %v592 = vmul.f32 %v574, %v591
    %v593 = vmul.f32 %v578, %v591
    %v594 = vmul.f32 %v582, %v591
    %v595 = vmul.f32 %v586, %v591
    %v596 = vadd.f32 %v568, %v592
    %v597 = vadd.f32 %v569, %v593
    %v598 = vadd.f32 %v570, %v594
    %v599 = vadd.f32 %v571, %v595
    %600 = vset.pattern.permute.xlu0 6
    %601 = vperm.xlu0 %600, %v37
    %v602 = vpop.permute.xlu0 %601
    %604 = vset.pattern.permute.xlu0 6
    %605 = vperm.xlu0 %604, %v38
    %v606 = vpop.permute.xlu0 %605
    %608 = vset.pattern.permute.xlu0 6
    %609 = vperm.xlu0 %608, %v39
    %v610 = vpop.permute.xlu0 %609
    %612 = vset.pattern.permute.xlu0 6
    %613 = vperm.xlu0 %612, %v40
    %v614 = vpop.permute.xlu0 %613
    %v616 = vadd.f32 %v596, %v602
    %v617 = vadd.f32 %v597, %v606
    %v618 = vadd.f32 %v598, %v610
    %v619 = vadd.f32 %v599, %v614
    %v620 = vmax.f32 %v616, 0.0
    %v621 = vmax.f32 %v617, 0.0
    %v622 = vmax.f32 %v618, 0.0
    %v623 = vmax.f32 %v619, 0.0
    %624 = vmatprep.subr.mxu0 0.0
    %625 = vmatpush1.msra.mxu0 %v620
    %626 = vmatprep.subr.mxu0 0.0
    %627 = vmatpush1.msra.mxu0 %v621
    %628 = vmatprep.subr.mxu0 0.0
    %629 = vmatpush1.msra.mxu0 %v622
    %630 = vmatprep.subr.mxu0 0.0
    %631 = vmatpush1.msra.mxu0 %v623
    %632 = vmatprep.subr.mxu0 0.0
    %633 = vmatpush1.msra.mxu0 0.0
    %634 = vmatprep.subr.mxu0 0.0
    %635 = vmatpush1.msra.mxu0 0.0
    %636 = vmatprep.subr.mxu0 0.0
    %637 = vmatpush1.msra.mxu0 0.0
    %638 = vmatprep.subr.mxu0 0.0
    %639 = vmatpush1.msra.mxu0 0.0
    %640 = vmatprep.subr.mxu0 0.0
    %641 = vmatpush1.msra.mxu0 0.0
    %642 = vmatprep.subr.mxu0 0.0
    %643 = vmatpush1.msra.mxu0 0.0
    %644 = vmatprep.subr.mxu0 0.0
    %645 = vmatpush1.msra.mxu0 0.0
    %646 = vmatprep.subr.mxu0 0.0
    %647 = vmatpush1.msra.mxu0 0.0
    %648 = vmatprep.subr.mxu0 0.0
    %649 = vmatpush1.msra.mxu0 0.0
    %650 = vmatprep.subr.mxu0 0.0
    %651 = vmatpush1.msra.mxu0 0.0
    %652 = vmatprep.subr.mxu0 0.0
    %653 = vmatpush1.msra.mxu0 0.0
    %654 = vmatprep.subr.mxu0 0.0
    %655 = vmatpush1.msra.mxu0 0.0
    %656 = vmatprep.subr.mxu0 0.0
    %657 = vmatpush1.msra.mxu0 0.0
    %658 = vmatprep.subr.mxu0 0.0
    %659 = vmatpush1.msra.mxu0 0.0
    %660 = vmatprep.subr.mxu0 0.0
    %661 = vmatpush1.msra.mxu0 0.0
    %662 = vmatprep.subr.mxu0 0.0
    %663 = vmatpush1.msra.mxu0 0.0
    %664 = vmatprep.subr.mxu0 0.0
    %665 = vmatpush1.msra.mxu0 0.0
    %666 = vmatprep.subr.mxu0 0.0
    %667 = vmatpush1.msra.mxu0 0.0
    %668 = vmatprep.subr.mxu0 0.0
    %669 = vmatpush1.msra.mxu0 0.0
    %670 = vmatprep.subr.mxu0 0.0
    %671 = vmatpush1.msra.mxu0 0.0
    %672 = vmatprep.subr.mxu0 0.0
    %673 = vmatpush1.msra.mxu0 0.0
    %674 = vmatprep.subr.mxu0 0.0
    %675 = vmatpush1.msra.mxu0 0.0
    %676 = vmatprep.subr.mxu0 0.0
    %677 = vmatpush1.msra.mxu0 0.0
    %678 = vmatprep.subr.mxu0 0.0
    %679 = vmatpush1.msra.mxu0 0.0
    %680 = vmatprep.subr.mxu0 0.0
    %681 = vmatpush1.msra.mxu0 0.0
    %682 = vmatprep.subr.mxu0 0.0
    %683 = vmatpush1.msra.mxu0 0.0
    %684 = vmatprep.subr.mxu0 0.0
    %685 = vmatpush1.msra.mxu0 0.0
    %686 = vmatprep.subr.mxu0 0.0
    %687 = vmatpush1.msra.mxu0 0.0
    %688 = vmatprep.mubr.f32.mxu0 0.0
    %689 = vmatmul.mubr.f32.gmra.mrb[0].mxu0 %v144
    %v690 = vpop.f32.mrb[0].mxu0
    %v691 = vadd.f32 %v128, %v690
    %v692 = vpop.f32.mrb[0].mxu0
    %693 = vmatprep.mubr.f32.mxu0 0.0
    %694 = vmatmul.mubr.f32.gmra.mrb[0].mxu0 %v147
    %v695 = vpop.f32.mrb[0].mxu0
    %v696 = vadd.f32 %v132, %v695
    %v697 = vpop.f32.mrb[0].mxu0
    %698 = vmatprep.mubr.f32.mxu0 0.0
    %699 = vmatmul.mubr.f32.gmra.mrb[0].mxu0 %v150
    %v700 = vpop.f32.mrb[0].mxu0
    %v701 = vadd.f32 %v136, %v700
    %v702 = vpop.f32.mrb[0].mxu0
    %703 = vmatprep.mubr.f32.mxu0 0.0
    %704 = vmatmul.mubr.f32.gmra.mrb[0].mxu0 %v153
    %v705 = vpop.f32.mrb[0].mxu0
    %v706 = vadd.f32 %v140, %v705
    %v707 = vpop.f32.mrb[0].mxu0
    %708 = vdwg.mxu0
    %v709 = vmax.f32 %v691, 0.0
    %v710 = vmax.f32 %v696, 0.0
    %v711 = vmax.f32 %v701, 0.0
    %v712 = vmax.f32 %v706, 0.0
    %v713 = vstv %s45
    %714 = vmatprep.subr.mxu0 0.0
    %715 = vmatpush1.msra.mxu0 %v709
    %716 = vmatprep.subr.mxu0 0.0
    %717 = vmatpush1.msra.mxu0 %v710
    %718 = vmatprep.subr.mxu0 0.0
    %719 = vmatpush1.msra.mxu0 %v711
    %720 = vmatprep.subr.mxu0 0.0
    %721 = vmatpush1.msra.mxu0 %v712
    %722 = vmatprep.subr.mxu0 0.0
    %723 = vmatpush1.msra.mxu0 0.0
    %724 = vmatprep.subr.mxu0 0.0
    %725 = vmatpush1.msra.mxu0 0.0
    %726 = vmatprep.subr.mxu0 0.0
    %727 = vmatpush1.msra.mxu0 0.0
    %728 = vmatprep.subr.mxu0 0.0
    %729 = vmatpush1.msra.mxu0 0.0
    %730 = vmatprep.subr.mxu0 0.0
    %731 = vmatpush1.msra.mxu0 0.0
    %732 = vmatprep.subr.mxu0 0.0
    %733 = vmatpush1.msra.mxu0 0.0
    %734 = vmatprep.subr.mxu0 0.0
    %735 = vmatpush1.msra.mxu0 0.0
    %736 = vmatprep.subr.mxu0 0.0
    %737 = vmatpush1.msra.mxu0 0.0
    %738 = vmatprep.subr.mxu0 0.0
    %739 = vmatpush1.msra.mxu0 0.0
    %740 = vmatprep.subr.mxu0 0.0
    %741 = vmatpush1.msra.mxu0 0.0
    %742 = vmatprep.subr.mxu0 0.0
    %743 = vmatpush1.msra.mxu0 0.0
    %744 = vmatprep.subr.mxu0 0.0
    %745 = vmatpush1.msra.mxu0 0.0
    %746 = vmatprep.subr.mxu0 0.0
    %747 = vmatpush1.msra.mxu0 0.0
    %748 = vmatprep.subr.mxu0 0.0
    %749 = vmatpush1.msra.mxu0 0.0
    %750 = vmatprep.subr.mxu0 0.0
    %751 = vmatpush1.msra.mxu0 0.0
    %752 = vmatprep.subr.mxu0 0.0
    %753 = vmatpush1.msra.mxu0 0.0
    %754 = vmatprep.subr.mxu0 0.0
    %755 = vmatpush1.msra.mxu0 0.0
    %756 = vmatprep.subr.mxu0 0.0
    %757 = vmatpush1.msra.mxu0 0.0
    %758 = vmatprep.subr.mxu0 0.0
    %759 = vmatpush1.msra.mxu0 0.0
    %760 = vmatprep.subr.mxu0 0.0
    %761 = vmatpush1.msra.mxu0 0.0
    %762 = vmatprep.subr.mxu0 0.0
    %763 = vmatpush1.msra.mxu0 0.0
    %764 = vmatprep.subr.mxu0 0.0
    %765 = vmatpush1.msra.mxu0 0.0
    %766 = vmatprep.subr.mxu0 0.0
    %767 = vmatpush1.msra.mxu0 0.0
    %768 = vmatprep.subr.mxu0 0.0
    %769 = vmatpush1.msra.mxu0 0.0
    %770 = vmatprep.subr.mxu0 0.0
    %771 = vmatpush1.msra.mxu0 0.0
    %772 = vmatprep.subr.mxu0 0.0
    %773 = vmatpush1.msra.mxu0 0.0
    %774 = vmatprep.subr.mxu0 0.0
    %775 = vmatpush1.msra.mxu0 0.0
    %776 = vmatprep.subr.mxu0 0.0
    %777 = vmatpush1.msra.mxu0 0.0
    %778 = vmatprep.mubr.f32.mxu0 0.0
    %779 = vmatmul.mubr.f32.gmra.mrb[0].mxu0 %v245
    %v780 = vpop.f32.mrb[0].mxu0
    %v781 = vadd.f32 %v713, %v780
    %v782 = vpop.f32.mrb[0].mxu0
    %783 = vdwg.mxu0
    %784 = vst.msk [vmem:[#allocation5] sm:$0x1] %vm500, %v781
    // Predicated region
    $region22: #{arch21_forward.1} parent=1 // pred_check
      _
    $region23: #{arch21_forward.1} parent=1 // pred_check_branch
      %786 = sbr.rel (0) target = $region25
    $region24: #{arch21_forward.1} parent=1 // pred_region
      %s788 = ssub.s32 16, 16
      %789 = vsyncadd [#allocation3], %s788
      %s791 = sshll.u32 [#allocation5], 4
      %s792 = int_to_ptr.vmem [resolvable:$true] %s791
      %794 = dma.vmem_to_hbm [thread:$0]  %s792, 16, %s4, [#allocation3]
    $region25: #{arch21_forward.1} parent=1 // pred_fallthru
      _
    // Predicated region
    $region26: #{arch21_forward.1} parent=1 // pred_check
      _
    $region27: #{arch21_forward.1} parent=1 // pred_check_branch
      %796 = sbr.rel (0) target = $region29
    $region28: #{arch21_forward.1} parent=1 // pred_region
      %797 = dma.done [#allocation3], 16
    $region29: #{arch21_forward.1} parent=1 // pred_fallthru
      _
    %798 = vsyncpa [#allocation3], 1
    %799 = vsyncpa [#allocation4], 1

</llo_original>
